<compile_context>
chip_gen: v6e
topology: v6e:2x2x1
jax: 0.10.0
libtpu: 0.0.40
codegen_flags: <defaults>
</compile_context>

<pallas_src>
import functools

import jax
import jax.numpy as jnp
from jax.experimental import pallas as pl
from jax.experimental.pallas import tpu as pltpu


def _dyrelu_kernel(x_ref, w1t_ref, b1_ref, w2_ref, b2_ref, wspa_ref, bspa_ref,
                   out_ref, *, C, HW, lambda_a, tau):
    x = x_ref[...]                                    # (Bt, C, HW)
    Bt = x.shape[0]

    # ---- spatial attention first: its (Bt, C, HW)-sized temporary dies
    #      before the affine-remap epilogue is evaluated (halves peak temps) ----
    if C >= 128:
        # Route the channel reduction through the otherwise-idle MXU.
        w_row = wspa_ref[...].T                       # (1, C)
        s = jnp.stack(
            [jnp.dot(w_row, x[bi], preferred_element_type=jnp.float32)
             for bi in range(Bt)], axis=0)            # (Bt, 1, HW)
    else:
        s = jnp.sum(x * wspa_ref[...][None], axis=1, keepdims=True)   # (Bt, 1, HW)
    s = (s + bspa_ref[0]) * (1.0 / tau)

    # softmax over all spatial positions (temperature tau)
    m = jnp.max(s, axis=2, keepdims=True)             # (Bt, 1, 1)
    e = jnp.exp(s - m)
    denom = jnp.sum(e, axis=2, keepdims=True)         # (Bt, 1, 1)
    # exact reciprocal keeps the 1e-5 self-test tolerance (approx=True would go
    # to the EUP but adds ~1e-3 relative error on the denominator).
    ys = e * (pl.reciprocal(denom, approx=False) * float(HW))
    ys = jnp.clip(ys, 0.0, 3.0) * (1.0 / 3.0)         # (Bt, 1, HW)

    # ---- global average pool + tiny fc (VPU broadcast-reduce; negligible) ----
    y = jnp.mean(x, axis=2)                           # (Bt, C)
    h = jnp.sum(y[:, :, None] * w1t_ref[...][None], axis=1) + b1_ref[...]  # (Bt, hidden)
    h = jnp.maximum(h, 0.0)

    z = []
    for i in range(4):                                # split-major leading-dim index: free
        zi = jnp.sum(w2_ref[i][None] * h[:, None, :], axis=2) + b2_ref[i]  # (Bt, C)
        z.append(jnp.clip(zi + 3.0, 0.0, 6.0) * (1.0 / 6.0))               # h_sigmoid

    a1 = ((z[0] - 0.5) * lambda_a + 1.0)[:, :, None]  # (Bt, C, 1)
    b1c = (z[1] - 0.5)[:, :, None]
    a2 = ((z[2] - 0.5) * lambda_a)[:, :, None]
    b2c = (z[3] - 0.5)[:, :, None]

    # ---- fused epilogue: affine remap * spatial attention, single store ----
    out_ref[...] = (jnp.maximum(x * a1 + b1c, x * a2 + b2c) * ys).astype(out_ref.dtype)


def _choose_batch_block(B, plane_bytes):
    """Pick Bt (batch planes per grid step): big enough to amortize per-step
    overhead (~2 MB input blocks), small enough for double-buffered in+out
    blocks plus ~2 planes of temporaries to stay well under VMEM budgets."""
    budget = 24 << 20            # conservative across v5e/v6e/v7x
    target = 2 << 20             # ~2 MB per input block
    per_batch = 6 * plane_bytes  # 2x dbuf in + 2x dbuf out + ~2 planes of temps
    bt = max(1, min(B, budget // per_batch, -(-target // plane_bytes)))
    # keep >=2 grid steps (v7x has 2 TensorCores) when blocks stay >= 1 MiB
    if bt == B and B >= 2 and (B // 2) * plane_bytes >= (1 << 20):
        bt = B // 2
    while B % bt:                # largest divisor of B not exceeding bt
        bt -= 1
    return bt


def dyrelu_spa_att2(x, params, *, lambda_a=2.0, tau=10.0):
    """x: (B, C, H, W) float32. params: dict of kernel-ready weights."""
    B, C, H, W = x.shape
    HW = H * W
    x_flat = x.reshape(B, C, HW)

    w1t, b1 = params["w1t"], params["b1"]
    w2_4, b2_4 = params["w2_4"], params["b2_4"]
    wspa_eff, bspa_eff = params["wspa_eff"], params["bspa_eff"]
    hidden = w1t.shape[1]

    Bt = _choose_batch_block(B, C * HW * 4)
    kernel = functools.partial(_dyrelu_kernel, C=C, HW=HW,
                               lambda_a=lambda_a, tau=tau)

    out_flat = pl.pallas_call(
        kernel,
        out_shape=jax.ShapeDtypeStruct((B, C, HW), x.dtype),
        grid_spec=pltpu.PrefetchScalarGridSpec(
            num_scalar_prefetch=0,
            grid=(B // Bt,),
            in_specs=[
                pl.BlockSpec((Bt, C, HW), lambda b: (b, 0, 0)),      # x
                pl.BlockSpec((C, hidden), lambda b: (0, 0)),         # w1^T
                pl.BlockSpec((1, hidden), lambda b: (0, 0)),         # b1
                pl.BlockSpec((4, C, hidden), lambda b: (0, 0, 0)),   # w2 (split-major)
                pl.BlockSpec((4, 1, C), lambda b: (0, 0, 0)),        # b2 (split-major)
                pl.BlockSpec((C, 1), lambda b: (0, 0)),              # spa conv w (BN folded)
                pl.BlockSpec(memory_space=pltpu.MemorySpace.SMEM),   # spa conv b (scalar)
            ],
            out_specs=pl.BlockSpec((Bt, C, HW), lambda b: (b, 0, 0)),
        ),
        compiler_params=pltpu.CompilerParams(
            dimension_semantics=("parallel",),
            vmem_limit_bytes=48 * 1024 * 1024),
    )(x_flat, w1t, b1, w2_4, b2_4, wspa_eff, bspa_eff)

    return out_flat.reshape(B, C, H, W)


def make_params(key, inp, oup, reduction=4):
    """Deterministic synthetic parameter init (shapes match the PyTorch module)."""
    hidden = inp // reduction
    exp = 4  # K2=True, use_bias=True
    k1, k2, k3, k4, k5, k6 = jax.random.split(key, 6)
    w1 = jax.random.uniform(k1, (hidden, inp), jnp.float32, -0.5, 0.5)        # Linear(inp, hidden)
    b1 = jax.random.uniform(k2, (hidden,), jnp.float32, -0.5, 0.5)
    w2 = jax.random.uniform(k3, (oup * exp, hidden), jnp.float32, -0.5, 0.5)  # Linear(hidden, 4*oup)
    b2 = jax.random.uniform(k4, (oup * exp,), jnp.float32, -0.5, 0.5)
    w_spa = jax.random.uniform(k5, (inp,), jnp.float32, -0.5, 0.5)            # Conv2d(inp,1,1) weight
    b_spa = jax.random.uniform(k6, (), jnp.float32, -0.5, 0.5)

    # BatchNorm2d(1) inference-mode defaults, folded into the conv.
    gamma, beta, run_mean, run_var, eps = 1.0, 0.0, 0.0, 1.0, 1e-5
    bn_scale = gamma / jnp.sqrt(run_var + eps)
    bn_shift = beta - run_mean * bn_scale
    wspa_eff = (w_spa * bn_scale).astype(jnp.float32).reshape(inp, 1)
    bspa_eff = jnp.asarray(b_spa * bn_scale + bn_shift, jnp.float32).reshape(1)

    return {
        "w1t": w1.T,                                  # (inp, hidden)
        "b1": b1.reshape(1, hidden),                  # (1, hidden)
        "w2_4": w2.reshape(exp, oup, hidden),         # (4, oup, hidden) split-major
        "b2_4": b2.reshape(exp, 1, oup),              # (4, 1, oup)      split-major
        "wspa_eff": wspa_eff,                         # (inp, 1)
        "bspa_eff": bspa_eff,                         # (1,)  -> SMEM
        "_raw": (w1, b1, w2, b2, w_spa, b_spa, bn_scale, bn_shift),
    }


def dyrelu_reference(x, params, *, lambda_a=2.0, tau=10.0):
    """Pure-JAX reference mirroring the PyTorch forward (eval-mode BN)."""
    w1, b1, w2, b2, w_spa, b_spa, bn_scale, bn_shift = params["_raw"]
    B, C, H, W = x.shape
    y = x.mean(axis=(2, 3))                                       # (B, C)
    h = jnp.maximum(y @ w1.T + b1, 0.0)
    z = jnp.clip(h @ w2.T + b2 + 3.0, 0.0, 6.0) / 6.0             # (B, 4C)
    a1 = ((z[:, :C] - 0.5) * lambda_a + 1.0)[:, :, None, None]
    b1c = (z[:, C:2 * C] - 0.5)[:, :, None, None]
    a2 = ((z[:, 2 * C:3 * C] - 0.5) * lambda_a)[:, :, None, None]
    b2c = (z[:, 3 * C:4 * C] - 0.5)[:, :, None, None]
    out = jnp.maximum(x * a1 + b1c, x * a2 + b2c)
    s = jnp.einsum("bchw,c->bhw", x, w_spa) + b_spa
    s = s * bn_scale + bn_shift
    s = s.reshape(B, H * W)
    ys = jax.nn.softmax(s / tau, axis=1) * (H * W)
    ys = jnp.clip(ys, 0.0, 3.0) / 3.0
    return out * ys.reshape(B, 1, H, W)


if __name__ == "__main__":
    B, C, H, W = 2, 8, 16, 16   # inp = oup = 8, reduction=4 -> hidden=2
    key = jax.random.PRNGKey(0)
    kx, kp = jax.random.split(key)
    x = jax.random.normal(kx, (B, C, H, W), jnp.float32)
    params = make_params(kp, inp=C, oup=C, reduction=4)

    out = jax.block_until_ready(dyrelu_spa_att2(x, params))

    ref = dyrelu_reference(x, params)
    assert out.shape == (B, C, H, W)
    err = jnp.max(jnp.abs(out - ref))
    assert jnp.allclose(out, ref, atol=1e-5, rtol=1e-4), f"max abs err {err}"
    print("KERNEL_OK")
</pallas_src>

<mosaic_0001>
module attributes {stable_mosaic.version = 11 : i64} {
  func.func @_dyrelu_kernel(%arg0: i32, %arg1: memref<2x8x256xf32, #tpu.memory_space<vmem>>, %arg2: memref<8x2xf32, #tpu.memory_space<vmem>>, %arg3: memref<1x2xf32, #tpu.memory_space<vmem>>, %arg4: memref<4x8x2xf32, #tpu.memory_space<vmem>>, %arg5: memref<4x1x8xf32, #tpu.memory_space<vmem>>, %arg6: memref<8x1xf32, #tpu.memory_space<vmem>>, %arg7: memref<1xf32, #tpu.memory_space<smem>>, %arg8: memref<2x8x256xf32, #tpu.memory_space<vmem>>) attributes {dimension_semantics = [#tpu.dimension_semantics<parallel>], iteration_bounds = array<i64: 1>, scalar_prefetch = 0 : i64, scratch_operands = 0 : i64, tpu.core_type = #tpu.core_type<tc>, window_params = [{transform_indices = @transform_0, window_bounds = array<i64: 2, 8, 256>}, {pipeline_mode = #tpu.pipeline_mode<synchronous>, transform_indices = @transform_1, window_bounds = array<i64: 8, 2>}, {pipeline_mode = #tpu.pipeline_mode<synchronous>, transform_indices = @transform_2, window_bounds = array<i64: 1, 2>}, {pipeline_mode = #tpu.pipeline_mode<synchronous>, transform_indices = @transform_3, window_bounds = array<i64: 4, 8, 2>}, {pipeline_mode = #tpu.pipeline_mode<synchronous>, transform_indices = @transform_4, window_bounds = array<i64: 4, 1, 8>}, {pipeline_mode = #tpu.pipeline_mode<synchronous>, transform_indices = @transform_5, window_bounds = array<i64: 8, 1>}, {transform_indices = @transform_6, window_bounds = array<i64: 1>}, {transform_indices = @transform_7, window_bounds = array<i64: 2, 8, 256>}]} {
    %c0 = arith.constant 0 : index
    %c0_0 = arith.constant 0 : index
    %c0_1 = arith.constant 0 : index
    %0 = vector.load %arg1[%c0, %c0_0, %c0_1] : memref<2x8x256xf32, #tpu.memory_space<vmem>>, vector<2x8x256xf32>
    %c0_2 = arith.constant 0 : index
    %c0_3 = arith.constant 0 : index
    %1 = vector.load %arg6[%c0_2, %c0_3] : memref<8x1xf32, #tpu.memory_space<vmem>>, vector<8x1xf32>
    %2 = vector.shape_cast %1 : vector<8x1xf32> to vector<1x8x1xf32>
    %3 = vector.broadcast %2 : vector<1x8x1xf32> to vector<2x8x256xf32>
    %4 = arith.mulf %0, %3 : vector<2x8x256xf32>
    %cst = arith.constant dense<0.000000e+00> : vector<2x256xf32>
    %5 = vector.multi_reduction <add>, %4, %cst [1] : vector<2x8x256xf32> to vector<2x256xf32>
    %6 = vector.shape_cast %5 : vector<2x256xf32> to vector<2x1x256xf32>
    %c0_4 = arith.constant 0 : index
    %7 = memref.load %arg7[%c0_4] : memref<1xf32, #tpu.memory_space<smem>>
    %8 = vector.broadcast %7 : f32 to vector<2x1x256xf32>
    %9 = arith.addf %6, %8 : vector<2x1x256xf32>
    %cst_5 = arith.constant 1.000000e-01 : f32
    %10 = vector.broadcast %cst_5 : f32 to vector<2x1x256xf32>
    %11 = arith.mulf %9, %10 : vector<2x1x256xf32>
    %cst_6 = arith.constant dense<0xFF800000> : vector<2x1xf32>
    %12 = vector.multi_reduction <maximumf>, %11, %cst_6 [2] : vector<2x1x256xf32> to vector<2x1xf32>
    %13 = vector.shape_cast %12 : vector<2x1xf32> to vector<2x1x1xf32>
    %14 = vector.broadcast %13 : vector<2x1x1xf32> to vector<2x1x256xf32>
    %15 = arith.subf %11, %14 : vector<2x1x256xf32>
    %16 = math.exp %15 : vector<2x1x256xf32>
    %cst_7 = arith.constant dense<0.000000e+00> : vector<2x1xf32>
    %17 = vector.multi_reduction <add>, %16, %cst_7 [2] : vector<2x1x256xf32> to vector<2x1xf32>
    %18 = vector.shape_cast %17 : vector<2x1xf32> to vector<2x1x1xf32>
    %19 = tpu.reciprocal %18 : vector<2x1x1xf32> -> vector<2x1x1xf32>
    %cst_8 = arith.constant 2.560000e+02 : f32
    %20 = vector.broadcast %cst_8 : f32 to vector<2x1x1xf32>
    %21 = arith.mulf %19, %20 : vector<2x1x1xf32>
    %22 = vector.broadcast %21 : vector<2x1x1xf32> to vector<2x1x256xf32>
    %23 = arith.mulf %16, %22 : vector<2x1x256xf32>
    %cst_9 = arith.constant 0.000000e+00 : f32
    %cst_10 = arith.constant 3.000000e+00 : f32
    %24 = vector.broadcast %cst_9 : f32 to vector<2x1x256xf32>
    %25 = arith.maximumf %24, %23 : vector<2x1x256xf32>
    %26 = vector.broadcast %cst_10 : f32 to vector<2x1x256xf32>
    %27 = arith.minimumf %26, %25 : vector<2x1x256xf32>
    %cst_11 = arith.constant 0.333333343 : f32
    %28 = vector.broadcast %cst_11 : f32 to vector<2x1x256xf32>
    %29 = arith.mulf %27, %28 : vector<2x1x256xf32>
    %cst_12 = arith.constant dense<0.000000e+00> : vector<2x8xf32>
    %30 = vector.multi_reduction <add>, %0, %cst_12 [2] : vector<2x8x256xf32> to vector<2x8xf32>
    %cst_13 = arith.constant 2.560000e+02 : f32
    %31 = vector.broadcast %cst_13 : f32 to vector<2x8xf32>
    %32 = arith.divf %30, %31 : vector<2x8xf32>
    %33 = vector.shape_cast %32 : vector<2x8xf32> to vector<2x8x1xf32>
    %c0_14 = arith.constant 0 : index
    %c0_15 = arith.constant 0 : index
    %34 = vector.load %arg2[%c0_14, %c0_15] : memref<8x2xf32, #tpu.memory_space<vmem>>, vector<8x2xf32>
    %35 = vector.shape_cast %34 : vector<8x2xf32> to vector<1x8x2xf32>
    %36 = vector.broadcast %33 : vector<2x8x1xf32> to vector<2x8x2xf32>
    %37 = vector.broadcast %35 : vector<1x8x2xf32> to vector<2x8x2xf32>
    %38 = arith.mulf %36, %37 : vector<2x8x2xf32>
    %cst_16 = arith.constant dense<0.000000e+00> : vector<2x2xf32>
    %39 = vector.multi_reduction <add>, %38, %cst_16 [1] : vector<2x8x2xf32> to vector<2x2xf32>
    %c0_17 = arith.constant 0 : index
    %c0_18 = arith.constant 0 : index
    %40 = vector.load %arg3[%c0_17, %c0_18] : memref<1x2xf32, #tpu.memory_space<vmem>>, vector<1x2xf32>
    %41 = vector.broadcast %40 : vector<1x2xf32> to vector<2x2xf32>
    %42 = arith.addf %39, %41 : vector<2x2xf32>
    %cst_19 = arith.constant 0.000000e+00 : f32
    %43 = vector.broadcast %cst_19 : f32 to vector<2x2xf32>
    %44 = arith.maximumf %42, %43 : vector<2x2xf32>
    %c0_20 = arith.constant 0 : index
    %c0_21 = arith.constant 0 : index
    %c0_22 = arith.constant 0 : index
    %45 = vector.load %arg4[%c0_20, %c0_21, %c0_22] : memref<4x8x2xf32, #tpu.memory_space<vmem>>, vector<1x8x2xf32>
    %46 = vector.shape_cast %45 : vector<1x8x2xf32> to vector<8x2xf32>
    %47 = vector.shape_cast %46 : vector<8x2xf32> to vector<1x8x2xf32>
    %48 = vector.shape_cast %44 : vector<2x2xf32> to vector<2x1x2xf32>
    %49 = vector.broadcast %47 : vector<1x8x2xf32> to vector<2x8x2xf32>
    %50 = vector.broadcast %48 : vector<2x1x2xf32> to vector<2x8x2xf32>
    %51 = arith.mulf %49, %50 : vector<2x8x2xf32>
    %cst_23 = arith.constant dense<0.000000e+00> : vector<2x8xf32>
    %52 = vector.multi_reduction <add>, %51, %cst_23 [2] : vector<2x8x2xf32> to vector<2x8xf32>
    %c0_24 = arith.constant 0 : index
    %c0_25 = arith.constant 0 : index
    %c0_26 = arith.constant 0 : index
    %53 = vector.load %arg5[%c0_24, %c0_25, %c0_26] : memref<4x1x8xf32, #tpu.memory_space<vmem>>, vector<1x1x8xf32>
    %54 = vector.shape_cast %53 : vector<1x1x8xf32> to vector<1x8xf32>
    %55 = vector.broadcast %54 : vector<1x8xf32> to vector<2x8xf32>
    %56 = arith.addf %52, %55 : vector<2x8xf32>
    %cst_27 = arith.constant 3.000000e+00 : f32
    %57 = vector.broadcast %cst_27 : f32 to vector<2x8xf32>
    %58 = arith.addf %56, %57 : vector<2x8xf32>
    %cst_28 = arith.constant 0.000000e+00 : f32
    %cst_29 = arith.constant 6.000000e+00 : f32
    %59 = vector.broadcast %cst_28 : f32 to vector<2x8xf32>
    %60 = arith.maximumf %59, %58 : vector<2x8xf32>
    %61 = vector.broadcast %cst_29 : f32 to vector<2x8xf32>
    %62 = arith.minimumf %61, %60 : vector<2x8xf32>
    %cst_30 = arith.constant 0.166666672 : f32
    %63 = vector.broadcast %cst_30 : f32 to vector<2x8xf32>
    %64 = arith.mulf %62, %63 : vector<2x8xf32>
    %c1 = arith.constant 1 : index
    %c0_31 = arith.constant 0 : index
    %c0_32 = arith.constant 0 : index
    %65 = vector.load %arg4[%c1, %c0_31, %c0_32] : memref<4x8x2xf32, #tpu.memory_space<vmem>>, vector<1x8x2xf32>
    %66 = vector.shape_cast %65 : vector<1x8x2xf32> to vector<8x2xf32>
    %67 = vector.shape_cast %66 : vector<8x2xf32> to vector<1x8x2xf32>
    %68 = vector.shape_cast %44 : vector<2x2xf32> to vector<2x1x2xf32>
    %69 = vector.broadcast %67 : vector<1x8x2xf32> to vector<2x8x2xf32>
    %70 = vector.broadcast %68 : vector<2x1x2xf32> to vector<2x8x2xf32>
    %71 = arith.mulf %69, %70 : vector<2x8x2xf32>
    %cst_33 = arith.constant dense<0.000000e+00> : vector<2x8xf32>
    %72 = vector.multi_reduction <add>, %71, %cst_33 [2] : vector<2x8x2xf32> to vector<2x8xf32>
    %c1_34 = arith.constant 1 : index
    %c0_35 = arith.constant 0 : index
    %c0_36 = arith.constant 0 : index
    %73 = vector.load %arg5[%c1_34, %c0_35, %c0_36] : memref<4x1x8xf32, #tpu.memory_space<vmem>>, vector<1x1x8xf32>
    %74 = vector.shape_cast %73 : vector<1x1x8xf32> to vector<1x8xf32>
    %75 = vector.broadcast %74 : vector<1x8xf32> to vector<2x8xf32>
    %76 = arith.addf %72, %75 : vector<2x8xf32>
    %cst_37 = arith.constant 3.000000e+00 : f32
    %77 = vector.broadcast %cst_37 : f32 to vector<2x8xf32>
    %78 = arith.addf %76, %77 : vector<2x8xf32>
    %cst_38 = arith.constant 0.000000e+00 : f32
    %cst_39 = arith.constant 6.000000e+00 : f32
    %79 = vector.broadcast %cst_38 : f32 to vector<2x8xf32>
    %80 = arith.maximumf %79, %78 : vector<2x8xf32>
    %81 = vector.broadcast %cst_39 : f32 to vector<2x8xf32>
    %82 = arith.minimumf %81, %80 : vector<2x8xf32>
    %cst_40 = arith.constant 0.166666672 : f32
    %83 = vector.broadcast %cst_40 : f32 to vector<2x8xf32>
    %84 = arith.mulf %82, %83 : vector<2x8xf32>
    %c2 = arith.constant 2 : index
    %c0_41 = arith.constant 0 : index
    %c0_42 = arith.constant 0 : index
    %85 = vector.load %arg4[%c2, %c0_41, %c0_42] : memref<4x8x2xf32, #tpu.memory_space<vmem>>, vector<1x8x2xf32>
    %86 = vector.shape_cast %85 : vector<1x8x2xf32> to vector<8x2xf32>
    %87 = vector.shape_cast %86 : vector<8x2xf32> to vector<1x8x2xf32>
    %88 = vector.shape_cast %44 : vector<2x2xf32> to vector<2x1x2xf32>
    %89 = vector.broadcast %87 : vector<1x8x2xf32> to vector<2x8x2xf32>
    %90 = vector.broadcast %88 : vector<2x1x2xf32> to vector<2x8x2xf32>
    %91 = arith.mulf %89, %90 : vector<2x8x2xf32>
    %cst_43 = arith.constant dense<0.000000e+00> : vector<2x8xf32>
    %92 = vector.multi_reduction <add>, %91, %cst_43 [2] : vector<2x8x2xf32> to vector<2x8xf32>
    %c2_44 = arith.constant 2 : index
    %c0_45 = arith.constant 0 : index
    %c0_46 = arith.constant 0 : index
    %93 = vector.load %arg5[%c2_44, %c0_45, %c0_46] : memref<4x1x8xf32, #tpu.memory_space<vmem>>, vector<1x1x8xf32>
    %94 = vector.shape_cast %93 : vector<1x1x8xf32> to vector<1x8xf32>
    %95 = vector.broadcast %94 : vector<1x8xf32> to vector<2x8xf32>
    %96 = arith.addf %92, %95 : vector<2x8xf32>
    %cst_47 = arith.constant 3.000000e+00 : f32
    %97 = vector.broadcast %cst_47 : f32 to vector<2x8xf32>
    %98 = arith.addf %96, %97 : vector<2x8xf32>
    %cst_48 = arith.constant 0.000000e+00 : f32
    %cst_49 = arith.constant 6.000000e+00 : f32
    %99 = vector.broadcast %cst_48 : f32 to vector<2x8xf32>
    %100 = arith.maximumf %99, %98 : vector<2x8xf32>
    %101 = vector.broadcast %cst_49 : f32 to vector<2x8xf32>
    %102 = arith.minimumf %101, %100 : vector<2x8xf32>
    %cst_50 = arith.constant 0.166666672 : f32
    %103 = vector.broadcast %cst_50 : f32 to vector<2x8xf32>
    %104 = arith.mulf %102, %103 : vector<2x8xf32>
    %c3 = arith.constant 3 : index
    %c0_51 = arith.constant 0 : index
    %c0_52 = arith.constant 0 : index
    %105 = vector.load %arg4[%c3, %c0_51, %c0_52] : memref<4x8x2xf32, #tpu.memory_space<vmem>>, vector<1x8x2xf32>
    %106 = vector.shape_cast %105 : vector<1x8x2xf32> to vector<8x2xf32>
    %107 = vector.shape_cast %106 : vector<8x2xf32> to vector<1x8x2xf32>
    %108 = vector.shape_cast %44 : vector<2x2xf32> to vector<2x1x2xf32>
    %109 = vector.broadcast %107 : vector<1x8x2xf32> to vector<2x8x2xf32>
    %110 = vector.broadcast %108 : vector<2x1x2xf32> to vector<2x8x2xf32>
    %111 = arith.mulf %109, %110 : vector<2x8x2xf32>
    %cst_53 = arith.constant dense<0.000000e+00> : vector<2x8xf32>
    %112 = vector.multi_reduction <add>, %111, %cst_53 [2] : vector<2x8x2xf32> to vector<2x8xf32>
    %c3_54 = arith.constant 3 : index
    %c0_55 = arith.constant 0 : index
    %c0_56 = arith.constant 0 : index
    %113 = vector.load %arg5[%c3_54, %c0_55, %c0_56] : memref<4x1x8xf32, #tpu.memory_space<vmem>>, vector<1x1x8xf32>
    %114 = vector.shape_cast %113 : vector<1x1x8xf32> to vector<1x8xf32>
    %115 = vector.broadcast %114 : vector<1x8xf32> to vector<2x8xf32>
    %116 = arith.addf %112, %115 : vector<2x8xf32>
    %cst_57 = arith.constant 3.000000e+00 : f32
    %117 = vector.broadcast %cst_57 : f32 to vector<2x8xf32>
    %118 = arith.addf %116, %117 : vector<2x8xf32>
    %cst_58 = arith.constant 0.000000e+00 : f32
    %cst_59 = arith.constant 6.000000e+00 : f32
    %119 = vector.broadcast %cst_58 : f32 to vector<2x8xf32>
    %120 = arith.maximumf %119, %118 : vector<2x8xf32>
    %121 = vector.broadcast %cst_59 : f32 to vector<2x8xf32>
    %122 = arith.minimumf %121, %120 : vector<2x8xf32>
    %cst_60 = arith.constant 0.166666672 : f32
    %123 = vector.broadcast %cst_60 : f32 to vector<2x8xf32>
    %124 = arith.mulf %122, %123 : vector<2x8xf32>
    %cst_61 = arith.constant 5.000000e-01 : f32
    %125 = vector.broadcast %cst_61 : f32 to vector<2x8xf32>
    %126 = arith.subf %64, %125 : vector<2x8xf32>
    %cst_62 = arith.constant 2.000000e+00 : f32
    %127 = vector.broadcast %cst_62 : f32 to vector<2x8xf32>
    %128 = arith.mulf %126, %127 : vector<2x8xf32>
    %cst_63 = arith.constant 1.000000e+00 : f32
    %129 = vector.broadcast %cst_63 : f32 to vector<2x8xf32>
    %130 = arith.addf %128, %129 : vector<2x8xf32>
    %131 = vector.shape_cast %130 : vector<2x8xf32> to vector<2x8x1xf32>
    %cst_64 = arith.constant 5.000000e-01 : f32
    %132 = vector.broadcast %cst_64 : f32 to vector<2x8xf32>
    %133 = arith.subf %84, %132 : vector<2x8xf32>
    %134 = vector.shape_cast %133 : vector<2x8xf32> to vector<2x8x1xf32>
    %cst_65 = arith.constant 5.000000e-01 : f32
    %135 = vector.broadcast %cst_65 : f32 to vector<2x8xf32>
    %136 = arith.subf %104, %135 : vector<2x8xf32>
    %cst_66 = arith.constant 2.000000e+00 : f32
    %137 = vector.broadcast %cst_66 : f32 to vector<2x8xf32>
    %138 = arith.mulf %136, %137 : vector<2x8xf32>
    %139 = vector.shape_cast %138 : vector<2x8xf32> to vector<2x8x1xf32>
    %cst_67 = arith.constant 5.000000e-01 : f32
    %140 = vector.broadcast %cst_67 : f32 to vector<2x8xf32>
    %141 = arith.subf %124, %140 : vector<2x8xf32>
    %142 = vector.shape_cast %141 : vector<2x8xf32> to vector<2x8x1xf32>
    %143 = vector.broadcast %131 : vector<2x8x1xf32> to vector<2x8x256xf32>
    %144 = arith.mulf %0, %143 : vector<2x8x256xf32>
    %145 = vector.broadcast %134 : vector<2x8x1xf32> to vector<2x8x256xf32>
    %146 = arith.addf %144, %145 : vector<2x8x256xf32>
    %147 = vector.broadcast %139 : vector<2x8x1xf32> to vector<2x8x256xf32>
    %148 = arith.mulf %0, %147 : vector<2x8x256xf32>
    %149 = vector.broadcast %142 : vector<2x8x1xf32> to vector<2x8x256xf32>
    %150 = arith.addf %148, %149 : vector<2x8x256xf32>
    %151 = arith.maximumf %146, %150 : vector<2x8x256xf32>
    %152 = vector.broadcast %29 : vector<2x1x256xf32> to vector<2x8x256xf32>
    %153 = arith.mulf %151, %152 : vector<2x8x256xf32>
    %c0_68 = arith.constant 0 : index
    %c0_69 = arith.constant 0 : index
    %c0_70 = arith.constant 0 : index
    %154 = vector.load %arg8[%c0_68, %c0_69, %c0_70] : memref<2x8x256xf32, #tpu.memory_space<vmem>>, vector<2x8x256xf32>
    tpu.vector_store %arg8[%c0_68, %c0_69, %c0_70], %153 {strides = array<i32>} : memref<2x8x256xf32, #tpu.memory_space<vmem>>, vector<2x8x256xf32>,
    return
  }
  func.func @transform_0(%arg0: i32) -> (i32, i32, i32) {
    %c0_i32 = arith.constant 0 : i32
    %c0_i32_0 = arith.constant 0 : i32
    %c0_i32_1 = arith.constant 0 : i32
    return %arg0, %c0_i32, %c0_i32_0 : i32, i32, i32
  }
  func.func @transform_1(%arg0: i32) -> (i32, i32) {
    %c0_i32 = arith.constant 0 : i32
    %c0_i32_0 = arith.constant 0 : i32
    %c0_i32_1 = arith.constant 0 : i32
    return %c0_i32, %c0_i32_0 : i32, i32
  }
  func.func @transform_2(%arg0: i32) -> (i32, i32) {
    %c0_i32 = arith.constant 0 : i32
    %c0_i32_0 = arith.constant 0 : i32
    %c0_i32_1 = arith.constant 0 : i32
    return %c0_i32, %c0_i32_0 : i32, i32
  }
  func.func @transform_3(%arg0: i32) -> (i32, i32, i32) {
    %c0_i32 = arith.constant 0 : i32
    %c0_i32_0 = arith.constant 0 : i32
    %c0_i32_1 = arith.constant 0 : i32
    %c0_i32_2 = arith.constant 0 : i32
    return %c0_i32, %c0_i32_0, %c0_i32_1 : i32, i32, i32
  }
  func.func @transform_4(%arg0: i32) -> (i32, i32, i32) {
    %c0_i32 = arith.constant 0 : i32
    %c0_i32_0 = arith.constant 0 : i32
    %c0_i32_1 = arith.constant 0 : i32
    %c0_i32_2 = arith.constant 0 : i32
    return %c0_i32, %c0_i32_0, %c0_i32_1 : i32, i32, i32
  }
  func.func @transform_5(%arg0: i32) -> (i32, i32) {
    %c0_i32 = arith.constant 0 : i32
    %c0_i32_0 = arith.constant 0 : i32
    %c0_i32_1 = arith.constant 0 : i32
    return %c0_i32, %c0_i32_0 : i32, i32
  }
  func.func @transform_6(%arg0: i32) -> i32 {
    %c0_i32 = arith.constant 0 : i32
    %c0_i32_0 = arith.constant 0 : i32
    return %c0_i32 : i32
  }
  func.func @transform_7(%arg0: i32) -> (i32, i32, i32) {
    %c0_i32 = arith.constant 0 : i32
    %c0_i32_0 = arith.constant 0 : i32
    %c0_i32_1 = arith.constant 0 : i32
    return %arg0, %c0_i32, %c0_i32_0 : i32, i32, i32
  }
}

</mosaic_0001>

<llo_original>
// kernel: tpu_custom_call.1
$region0: #{tpu_custom_call.1}
  #allocation0 [shape = 'u32[]', space=smem, size = 0x4, offset = 0x4, fixed_abs, tag = 'smem constant byte address 0x4 - core index']
  #allocation1 [shape = 'u32[144,128]{1,0:T(1,128)}', space=vmem, size = 0x12000, scoped, tag = 'internal scratch']
  #allocation2 [shape = 'f32[1]{0:T(128)S(6)}', space=smem, size = 0x200, scoped, tag = 'scoped memory for tpu_custom_call.1']
  %s0 = inlined_call_operand.vmem [shape: f32[2,8,256], index: 0, kind: input, shape index: {}]
  %s1 = inlined_call_operand.vmem [shape: f32[8,2], index: 1, kind: input, shape index: {}]
  %s2 = inlined_call_operand.vmem [shape: f32[1,2], index: 2, kind: input, shape index: {}]
  %s3 = inlined_call_operand.vmem [shape: f32[4,8,2], index: 3, kind: input, shape index: {}]
  %s4 = inlined_call_operand.vmem [shape: f32[4,1,8], index: 4, kind: input, shape index: {}]
  %s5 = inlined_call_operand.vmem [shape: f32[8,1], index: 5, kind: input, shape index: {}]
  %s6 = inlined_call_operand.<no memory space> [shape: f32[1], index: 6, kind: input, shape index: {}]
  %s7 = inlined_call_operand.hbm [shape: f32[2,8,256], index: 7, kind: output, shape index: {}]
  %s8 = sld [smem:[#allocation0]]
  $region38: #{tpu_custom_call.1} parent=0
    _
  %s10 = ssub.s32 1, %s8
  %s11 = scalar_select 0, %s10, %s8
  %12 = sst [smem:[#allocation2]] %s6
  $region1: #{tpu_custom_call.1} parent=0
    #allocation3 [shape = 'u8[16384]{0}', space=vmem, size = 0x4000, scoped, tag = 'output window, operand 0, single buffered']
    #allocation4 [shape = 's32[1]{0}', space=sflag, size = 0x4, scoped, tag = 'scoped memory for tpu_custom_call.1']
    %13 = vsyncpa [#allocation4], 0
    // Predicated region
    $region2: #{tpu_custom_call.1} parent=1 // pred_check
      _
    $region3: #{tpu_custom_call.1} parent=1 // pred_check_branch
      %15 = sbr.rel (0) target = $region5
    $region4: #{tpu_custom_call.1} parent=1 // pred_region
      _
    $region5: #{tpu_custom_call.1} parent=1 // pred_fallthru
      _
    // Predicated region
    $region6: #{tpu_custom_call.1} parent=1 // pred_check
      _
    $region7: #{tpu_custom_call.1} parent=1 // pred_check_branch
      %17 = sbr.rel (0) target = $region9
    $region8: #{tpu_custom_call.1} parent=1 // pred_region
      _
    $region9: #{tpu_custom_call.1} parent=1 // pred_fallthru
      _
    // Predicated region
    $region10: #{tpu_custom_call.1} parent=1 // pred_check
      _
    $region11: #{tpu_custom_call.1} parent=1 // pred_check_branch
      %19 = sbr.rel (0) target = $region13
    $region12: #{tpu_custom_call.1} parent=1 // pred_region
      _
    $region13: #{tpu_custom_call.1} parent=1 // pred_fallthru
      _
    // Predicated region
    $region14: #{tpu_custom_call.1} parent=1 // pred_check
      _
    $region15: #{tpu_custom_call.1} parent=1 // pred_check_branch
      %21 = sbr.rel (0) target = $region17
    $region16: #{tpu_custom_call.1} parent=1 // pred_region
      _
    $region17: #{tpu_custom_call.1} parent=1 // pred_fallthru
      _
    // Predicated region
    $region18: #{tpu_custom_call.1} parent=1 // pred_check
      _
    $region19: #{tpu_custom_call.1} parent=1 // pred_check_branch
      %23 = sbr.rel (0) target = $region21
    $region20: #{tpu_custom_call.1} parent=1 // pred_region
      _
    $region21: #{tpu_custom_call.1} parent=1 // pred_fallthru
      _
    // Predicated region
    $region22: #{tpu_custom_call.1} parent=1 // pred_check
      _
    $region23: #{tpu_custom_call.1} parent=1 // pred_check_branch
      %25 = sbr.rel (0) target = $region25
    $region24: #{tpu_custom_call.1} parent=1 // pred_region
      _
    $region25: #{tpu_custom_call.1} parent=1 // pred_fallthru
      _
    // Predicated region
    $region26: #{tpu_custom_call.1} parent=1 // pred_check
      _
    $region27: #{tpu_custom_call.1} parent=1 // pred_check_branch
      %27 = sbr.rel (0) target = $region29
    $region28: #{tpu_custom_call.1} parent=1 // pred_region
      _
    $region29: #{tpu_custom_call.1} parent=1 // pred_fallthru
      _
    %v28 = vld [vmem:[%s0] sm:$0xff]
    %v29 = vld [vmem:[%s0 + $0x8] sm:$0xff]
    %v30 = vld [vmem:[%s0 + $0x10] sm:$0xff]
    %v31 = vld [vmem:[%s0 + $0x18] sm:$0xff]
    %v32 = vld [vmem:[%s5] sm:$0xff]
    %34 = vset.pattern.permute.xlu0 0
    %35 = vperm.xlu0 %34, %v32
    %v36 = vpop.permute.xlu0 %35
    %v38 = vmul.f32 %v28, %v36
    %v39 = vmul.f32 %v29, %v36
    %v40 = vmul.f32 %v30, %v36
    %v41 = vmul.f32 %v31, %v36
    %v42 = vrot.slane %v38, 4
    %v43 = vadd.f32 %v38, %v42
    %v44 = vrot.slane %v43, 2
    %v45 = vadd.f32 %v43, %v44
    %v46 = vrot.slane %v45, 1
    %v47 = vadd.f32 %v45, %v46
    %v48 = vrot.slane %v39, 4
    %v49 = vadd.f32 %v39, %v48
    %v50 = vrot.slane %v49, 2
    %v51 = vadd.f32 %v49, %v50
    %v52 = vrot.slane %v51, 1
    %v53 = vadd.f32 %v51, %v52
    %v54 = vrot.slane %v40, 4
    %v55 = vadd.f32 %v40, %v54
    %v56 = vrot.slane %v55, 2
    %v57 = vadd.f32 %v55, %v56
    %v58 = vrot.slane %v57, 1
    %v59 = vadd.f32 %v57, %v58
    %v60 = vrot.slane %v41, 4
    %v61 = vadd.f32 %v41, %v60
    %v62 = vrot.slane %v61, 2
    %v63 = vadd.f32 %v61, %v62
    %v64 = vrot.slane %v63, 1
    %v65 = vadd.f32 %v63, %v64
    %s66 = sld [smem:[#allocation2]]
    %v67 = vstv %s66
    %v68 = vadd.f32 %v47, %v67
    %v69 = vadd.f32 %v53, %v67
    %v70 = vadd.f32 %v59, %v67
    %v71 = vadd.f32 %v65, %v67
    %v72 = vmul.f32 %v68, 0.1
    %v73 = vmul.f32 %v69, 0.1
    %v74 = vmul.f32 %v70, 0.1
    %v75 = vmul.f32 %v71, 0.1
    %v76 = vmax.f32 %v72, %v73
    %77 = vmax.xlane.f32.xlu0 %v76
    %v78 = vpop.xlane.xlu0 %77
    %v79 = vmax.f32 %v74, %v75
    %80 = vmax.xlane.f32.xlu0 %v79
    %v81 = vpop.xlane.xlu0 %80
    %v82 = vsub.f32 %v72, %v78
    %v83 = vsub.f32 %v73, %v78
    %v84 = vsub.f32 %v74, %v81
    %v85 = vsub.f32 %v75, %v81
    %v86 = vmul.f32 %v82, 1.442695
    %v87 = vpow.pop %v86
    %v88 = vmul.f32 %v83, 1.442695
    %v89 = vpow.pop %v88
    %v90 = vmul.f32 %v84, 1.442695
    %v91 = vpow.pop %v90
    %v92 = vmul.f32 %v85, 1.442695
    %v93 = vpow.pop %v92
    %v94 = vadd.f32 %v87, %v89
    %95 = vadd.xlane.f32.xlu0 %v94
    %v96 = vpop.xlane.xlu0 %95
    %v97 = vadd.f32 %v91, %v93
    %98 = vadd.xlane.f32.xlu0 %v97
    %v99 = vpop.xlane.xlu0 %98
    %v100 = vrcp.pop %v96
    %v101 = vrcp.pop %v99
    %v102 = vmul.f32 %v100, 256.0
    %v103 = vmul.f32 %v101, 256.0
    %v104 = vmul.f32 %v87, %v102
    %v105 = vmul.f32 %v89, %v102
    %v106 = vmul.f32 %v91, %v103
    %v107 = vmul.f32 %v93, %v103
    %v108 = vmax.f32 %v104, 0.0
    %v109 = vmax.f32 %v105, 0.0
    %v110 = vmax.f32 %v106, 0.0
    %v111 = vmax.f32 %v107, 0.0
    %v112 = vmin.f32 %v108, 3.0
    %v113 = vmin.f32 %v109, 3.0
    %v114 = vmin.f32 %v110, 3.0
    %v115 = vmin.f32 %v111, 3.0
    %v116 = vmul.f32 %v112, 0.33333334
    %v117 = vmul.f32 %v113, 0.33333334
    %v118 = vmul.f32 %v114, 0.33333334
    %v119 = vmul.f32 %v115, 0.33333334
    %v120 = vadd.f32 %v28, %v29
    %121 = vadd.xlane.f32.xlu0 %v120
    %v122 = vpop.xlane.xlu0 %121
    %v123 = vadd.f32 %v30, %v31
    %124 = vadd.xlane.f32.xlu0 %v123
    %v125 = vpop.xlane.xlu0 %124
    %v126 = vrcp.pop 256.0
    %v127 = vmul.f32 %v122, %v126
    %v128 = vmul.f32 %v125, %v126
    %v129 = vld [vmem:[%s1] sm:$0xff]
    %v130 = vmul.f32 %v127, %v129
    %v131 = vmul.f32 %v128, %v129
    %vm132 = vcmask 15360
    %v133 = vsel %vm132, %v130, 0.0
    %v134 = vrot.slane %v133, 4
    %v135 = vadd.f32 %v133, %v134
    %v136 = vrot.slane %v135, 2
    %v137 = vadd.f32 %v135, %v136
    %v138 = vrot.slane %v137, 1
    %v139 = vadd.f32 %v137, %v138
    %v140 = vsel %vm132, %v131, 0.0
    %v141 = vrot.slane %v140, 4
    %v142 = vadd.f32 %v140, %v141
    %v143 = vrot.slane %v142, 2
    %v144 = vadd.f32 %v142, %v143
    %v145 = vrot.slane %v144, 1
    %v146 = vadd.f32 %v144, %v145
    %v147 = vld [vmem:[%s2] sm:$0x1]
    %v149 = vlaneseq
    %v150 = vshrl.u32 %v149, 7
    %v151 = vsub.s32 0, %v150
    %v152 = vrot.slane %v147, %v151
    %v154 = vadd.f32 %v139, %v152
    %v155 = vadd.f32 %v146, %v152
    %v156 = vmax.f32 %v154, 0.0
    %v157 = vmax.f32 %v155, 0.0
    %v158 = vld [vmem:[%s3] sm:$0xff]
    %v159 = vlaneseq
    %v160 = vshrl.u32 %v159, 7
    %v161 = vsub.s32 0, %v160
    %v162 = vrot.slane %v156, %v161
    %v163 = vlaneseq
    %v164 = vshrl.u32 %v163, 7
    %v165 = vsub.s32 0, %v164
    %v166 = vrot.slane %v157, %v165
    %v167 = vmul.f32 %v158, %v162
    %v168 = vmul.f32 %v158, %v166
    %v169 = vsel %vm132, %v167, 0.0
    %170 = vadd.xlane.f32.xlu0 %v169
    %v171 = vpop.xlane.xlu0 %170
    %v172 = vsel %vm132, %v168, 0.0
    %173 = vadd.xlane.f32.xlu0 %v172
    %v174 = vpop.xlane.xlu0 %173
    %v175 = vld [vmem:[%s4] sm:$0x1]
    %v177 = vlaneseq
    %v178 = vshrl.u32 %v177, 7
    %v179 = vsub.s32 0, %v178
    %v180 = vrot.slane %v175, %v179
    %182 = vbcast.lane.b32.xlu0 %v180, 256
    %v183 = vpop.permute.xlu0 %182
    %v185 = vadd.f32 %v171, %v183
    %v186 = vadd.f32 %v174, %v183
    %v187 = vadd.f32 %v185, 3.0
    %v188 = vadd.f32 %v186, 3.0
    %v189 = vmax.f32 %v187, 0.0
    %v190 = vmax.f32 %v188, 0.0
    %v191 = vmin.f32 %v189, 6.0
    %v192 = vmin.f32 %v190, 6.0
    %v193 = vmul.f32 %v191, 0.16666667
    %v194 = vmul.f32 %v192, 0.16666667
    %s195 = scalar_lea.vmem %s3, 8
    %v196 = vld [vmem:[%s195] sm:$0xff]
    %v197 = vmul.f32 %v196, %v162
    %v198 = vmul.f32 %v196, %v166
    %v199 = vsel %vm132, %v197, 0.0
    %200 = vadd.xlane.f32.xlu0 %v199
    %v201 = vpop.xlane.xlu0 %200
    %v202 = vsel %vm132, %v198, 0.0
    %203 = vadd.xlane.f32.xlu0 %v202
    %v204 = vpop.xlane.xlu0 %203
    %s205 = scalar_lea.vmem %s4, 1
    %v206 = vld [vmem:[%s205] sm:$0x1]
    %v208 = vlaneseq
    %v209 = vshrl.u32 %v208, 7
    %v210 = vsub.s32 0, %v209
    %v211 = vrot.slane %v206, %v210
    %213 = vbcast.lane.b32.xlu0 %v211, 256
    %v214 = vpop.permute.xlu0 %213
    %v216 = vadd.f32 %v201, %v214
    %v217 = vadd.f32 %v204, %v214
    %v218 = vadd.f32 %v216, 3.0
    %v219 = vadd.f32 %v217, 3.0
    %v220 = vmax.f32 %v218, 0.0
    %v221 = vmax.f32 %v219, 0.0
    %v222 = vmin.f32 %v220, 6.0
    %v223 = vmin.f32 %v221, 6.0
    %v224 = vmul.f32 %v222, 0.16666667
    %v225 = vmul.f32 %v223, 0.16666667
    %s226 = scalar_lea.vmem %s3, 16
    %v227 = vld [vmem:[%s226] sm:$0xff]
    %v228 = vmul.f32 %v227, %v162
    %v229 = vmul.f32 %v227, %v166
    %v230 = vsel %vm132, %v228, 0.0
    %231 = vadd.xlane.f32.xlu0 %v230
    %v232 = vpop.xlane.xlu0 %231
    %v233 = vsel %vm132, %v229, 0.0
    %234 = vadd.xlane.f32.xlu0 %v233
    %v235 = vpop.xlane.xlu0 %234
    %s236 = scalar_lea.vmem %s4, 2
    %v237 = vld [vmem:[%s236] sm:$0x1]
    %v239 = vlaneseq
    %v240 = vshrl.u32 %v239, 7
    %v241 = vsub.s32 0, %v240
    %v242 = vrot.slane %v237, %v241
    %244 = vbcast.lane.b32.xlu0 %v242, 256
    %v245 = vpop.permute.xlu0 %244
    %v247 = vadd.f32 %v232, %v245
    %v248 = vadd.f32 %v235, %v245
    %v249 = vadd.f32 %v247, 3.0
    %v250 = vadd.f32 %v248, 3.0
    %v251 = vmax.f32 %v249, 0.0
    %v252 = vmax.f32 %v250, 0.0
    %v253 = vmin.f32 %v251, 6.0
    %v254 = vmin.f32 %v252, 6.0
    %v255 = vmul.f32 %v253, 0.16666667
    %v256 = vmul.f32 %v254, 0.16666667
    %s257 = scalar_lea.vmem %s3, 24
    %v258 = vld [vmem:[%s257] sm:$0xff]
    %v259 = vmul.f32 %v258, %v162
    %v260 = vmul.f32 %v258, %v166
    %v261 = vsel %vm132, %v259, 0.0
    %262 = vadd.xlane.f32.xlu0 %v261
    %v263 = vpop.xlane.xlu0 %262
    %v264 = vsel %vm132, %v260, 0.0
    %265 = vadd.xlane.f32.xlu0 %v264
    %v266 = vpop.xlane.xlu0 %265
    %s267 = scalar_lea.vmem %s4, 3
    %v268 = vld [vmem:[%s267] sm:$0x1]
    %v270 = vlaneseq
    %v271 = vshrl.u32 %v270, 7
    %v272 = vsub.s32 0, %v271
    %v273 = vrot.slane %v268, %v272
    %275 = vbcast.lane.b32.xlu0 %v273, 256
    %v276 = vpop.permute.xlu0 %275
    %v278 = vadd.f32 %v263, %v276
    %v279 = vadd.f32 %v266, %v276
    %v280 = vadd.f32 %v278, 3.0
    %v281 = vadd.f32 %v279, 3.0
    %v282 = vmax.f32 %v280, 0.0
    %v283 = vmax.f32 %v281, 0.0
    %v284 = vmin.f32 %v282, 6.0
    %v285 = vmin.f32 %v283, 6.0
    %v286 = vmul.f32 %v284, 0.16666667
    %v287 = vmul.f32 %v285, 0.16666667
    %v288 = vsub.f32 %v193, 0.5
    %v289 = vsub.f32 %v194, 0.5
    %v290 = vmul.f32 %v288, 2.0
    %v291 = vmul.f32 %v289, 2.0
    %v292 = vadd.f32 %v290, 1.0
    %v293 = vadd.f32 %v291, 1.0
    %v294 = vsub.f32 %v224, 0.5
    %v295 = vsub.f32 %v225, 0.5
    %v296 = vsub.f32 %v255, 0.5
    %v297 = vsub.f32 %v256, 0.5
    %v298 = vmul.f32 %v296, 2.0
    %v299 = vmul.f32 %v297, 2.0
    %v300 = vsub.f32 %v286, 0.5
    %v301 = vsub.f32 %v287, 0.5
    %303 = vset.pattern.permute.xlu0 0
    %304 = vperm.xlu0 %303, %v292
    %v305 = vpop.permute.xlu0 %304
    %308 = vset.pattern.permute.xlu0 0
    %309 = vperm.xlu0 %308, %v293
    %v310 = vpop.permute.xlu0 %309
    %v312 = vmul.f32 %v28, %v305
    %v313 = vmul.f32 %v29, %v305
    %v314 = vmul.f32 %v30, %v310
    %v315 = vmul.f32 %v31, %v310
    %317 = vset.pattern.permute.xlu0 0
    %318 = vperm.xlu0 %317, %v294
    %v319 = vpop.permute.xlu0 %318
    %322 = vset.pattern.permute.xlu0 0
    %323 = vperm.xlu0 %322, %v295
    %v324 = vpop.permute.xlu0 %323
    %v326 = vadd.f32 %v312, %v319
    %v327 = vadd.f32 %v313, %v319
    %v328 = vadd.f32 %v314, %v324
    %v329 = vadd.f32 %v315, %v324
    %331 = vset.pattern.permute.xlu0 0
    %332 = vperm.xlu0 %331, %v298
    %v333 = vpop.permute.xlu0 %332
    %336 = vset.pattern.permute.xlu0 0
    %337 = vperm.xlu0 %336, %v299
    %v338 = vpop.permute.xlu0 %337
    %v340 = vmul.f32 %v28, %v333
    %v341 = vmul.f32 %v29, %v333
    %v342 = vmul.f32 %v30, %v338
    %v343 = vmul.f32 %v31, %v338
    %345 = vset.pattern.permute.xlu0 0
    %346 = vperm.xlu0 %345, %v300
    %v347 = vpop.permute.xlu0 %346
    %350 = vset.pattern.permute.xlu0 0
    %351 = vperm.xlu0 %350, %v301
    %v352 = vpop.permute.xlu0 %351
    %v354 = vadd.f32 %v340, %v347
    %v355 = vadd.f32 %v341, %v347
    %v356 = vadd.f32 %v342, %v352
    %v357 = vadd.f32 %v343, %v352
    %v358 = vmax.f32 %v326, %v354
    %v359 = vmax.f32 %v327, %v355
    %v360 = vmax.f32 %v328, %v356
    %v361 = vmax.f32 %v329, %v357
    %v362 = vmul.f32 %v358, %v116
    %v363 = vmul.f32 %v359, %v117
    %v364 = vmul.f32 %v360, %v118
    %v365 = vmul.f32 %v361, %v119
    %366 = vst [vmem:[#allocation3] sm:$0xff] %v362
    %367 = vst [vmem:[#allocation3 + $0x8] sm:$0xff] %v363
    %368 = vst [vmem:[#allocation3 + $0x10] sm:$0xff] %v364
    %369 = vst [vmem:[#allocation3 + $0x18] sm:$0xff] %v365
    // Predicated region
    $region30: #{tpu_custom_call.1} parent=1 // pred_check
      _
    $region31: #{tpu_custom_call.1} parent=1 // pred_check_branch
      %371 = sbr.rel (0) target = $region33
    $region32: #{tpu_custom_call.1} parent=1 // pred_region
      %s373 = ssub.s32 512, 512
      %374 = vsyncadd [#allocation4], %s373
      %s375 = sshll.u32 [#allocation3], 4
      %s376 = int_to_ptr.vmem [resolvable:$true] %s375
      %381 = dma.vmem_to_hbm [thread:$0]  %s376, 512, %s7, [#allocation4], 256, 256, 16
    $region33: #{tpu_custom_call.1} parent=1 // pred_fallthru
      _
    // Predicated region
    $region34: #{tpu_custom_call.1} parent=1 // pred_check
      _
    $region35: #{tpu_custom_call.1} parent=1 // pred_check_branch
      %383 = sbr.rel (0) target = $region37
    $region36: #{tpu_custom_call.1} parent=1 // pred_region
      %384 = dma.done [#allocation4], 512
    $region37: #{tpu_custom_call.1} parent=1 // pred_fallthru
      _
    %385 = vsyncpa [#allocation4], 1

</llo_original>
